<compile_context>
chip_gen: v6e
topology: v6e:2x2x1
jax: 0.10.0
libtpu: 0.0.40
codegen_flags: <defaults>
</compile_context>

<pallas_src>
import jax
import jax.numpy as jnp
from jax import lax
from jax.experimental import pallas as pl
from jax.experimental.pallas import tpu as pltpu


def _make_focal_kernel(br, lanes, tiles_per, n_tiles, ragged_rows):
    """Build the kernel with static config baked in via closure."""
    has_ragged = ragged_rows < br          # last real tile is partial
    full_limit = n_tiles - 1 if has_ragged else n_tiles

    def kernel(pred_ref, gt_ref, out_ref, acc_tot, acc_pos, acc_cnt):
        p = pl.program_id(0)               # parallel (per-core) slice
        j = pl.program_id(1)               # sequential reduction axis
        tile_id = p * tiles_per + j

        @pl.when(j == 0)
        def _init():
            acc_tot[...] = jnp.zeros_like(acc_tot)
            acc_pos[...] = jnp.zeros_like(acc_pos)
            acc_cnt[...] = jnp.zeros_like(acc_cnt)

        def accumulate(pred, gt):
            # One log per element; log argument selected BEFORE the
            # transcendental (no -inf*0 NaN from the unused branch).
            #   pos (gt==1): log(pred)   * (1-pred)^2 * 1
            #   neg (gt< 1): log(1-pred) * pred^2     * (1-gt)^4
            #   gt > 1 (pad): contributes nothing (matches reference).
            pos = gt == 1.0
            contrib = gt <= 1.0
            cnt_e = pos.astype(jnp.float32)            # num_pos indicator
            base = jnp.where(pos, pred, 1.0 - pred)
            amp = 1.0 - base                           # (1-pred) | pred
            omg = 1.0 - gt
            w = cnt_e + (omg * omg) * (omg * omg)      # 1 on pos, (1-gt)^4 on neg
            elem = jnp.log(base) * (amp * amp) * w
            loss_e = jnp.where(contrib, elem, 0.0)     # pos_loss + neg_loss
            pos_e = jnp.where(pos, elem, 0.0)          # pos_loss only

            # Partial reduce to a vreg-aligned (8, lanes) slab: pure VPU adds
            # (reshape preserves (8,128) tiles -> copy-free).
            acc_tot[...] += jnp.sum(loss_e.reshape(-1, 8, lanes), axis=0)
            acc_pos[...] += jnp.sum(pos_e.reshape(-1, 8, lanes), axis=0)
            acc_cnt[...] += jnp.sum(cnt_e.reshape(-1, 8, lanes), axis=0)

        if full_limit > 0:
            @pl.when(tile_id < full_limit)
            def _steady():
                # Mask-free hot path: no iota / compare / logical_and work.
                accumulate(pred_ref[...].astype(jnp.float32),
                           gt_ref[...].astype(jnp.float32))

        if has_ragged:
            @pl.when(tile_id == n_tiles - 1)
            def _ragged():
                # Only the single ragged last tile pays for the row mask.
                # Pre-masking (pred=0.5, gt=2.0) keeps garbage OOB rows out of
                # log/mul entirely; gt=2.0 self-masks via `contrib`.
                row_idx = lax.broadcasted_iota(jnp.int32, (br, lanes), 0)
                valid = row_idx < ragged_rows
                pred = jnp.where(valid, pred_ref[...].astype(jnp.float32), 0.5)
                gt = jnp.where(valid, gt_ref[...].astype(jnp.float32), 2.0)
                accumulate(pred, gt)

        @pl.when(j == pl.num_programs(1) - 1)
        def _finalize():
            # Each core writes only its own (1, 3, 8, lanes) output block;
            # the tiny cross-lane reduction happens in the wrapper.
            out_ref[0, 0, :, :] = acc_tot[...]
            out_ref[0, 1, :, :] = acc_pos[...]
            out_ref[0, 2, :, :] = acc_cnt[...]

    return kernel


def _partials_jax(pred, gt):
    """Pure-JAX partials (pos+neg loss, pos loss, num_pos) for tiny tails."""
    pred = pred.astype(jnp.float32)
    gt = gt.astype(jnp.float32)
    pos = gt == 1.0
    contrib = gt <= 1.0
    cnt = pos.astype(jnp.float32)
    base = jnp.where(pos, pred, 1.0 - pred)
    amp = 1.0 - base
    omg = 1.0 - gt
    w = cnt + (omg * omg) * (omg * omg)
    elem = jnp.log(base) * (amp * amp) * w
    tot = jnp.sum(jnp.where(contrib, elem, 0.0))
    posl = jnp.sum(jnp.where(pos, elem, 0.0))
    npos = jnp.sum(cnt)
    return tot, posl, npos


def focal_loss(pred, gt, *, block_rows=4096, lanes=128):
    """CornerNet focal loss. pred, gt: (B, C, H, W), pred in (0, 1)."""
    assert pred.shape == gt.shape
    total = int(pred.size)

    pred_flat = jnp.ravel(pred)
    gt_flat = jnp.ravel(gt)

    rows_main = total // lanes             # lane-aligned prefix rows
    tail = total - rows_main * lanes       # < lanes leftover elements

    tot = jnp.zeros((), jnp.float32)
    posl = jnp.zeros((), jnp.float32)
    npos = jnp.zeros((), jnp.float32)

    if rows_main > 0:
        # Sublane alignment for the second-to-last block dim: 8 for 32-bit,
        # 16 for 16-bit inputs (f32 cast happens inside the kernel).
        itemsize = min(pred.dtype.itemsize, gt.dtype.itemsize)
        sub = {4: 8, 2: 16, 1: 32}.get(int(itemsize), 8)

        br_cap = max(sub, (block_rows // sub) * sub)
        br = min(br_cap, ((rows_main + sub - 1) // sub) * sub)

        n_tiles = pl.cdiv(rows_main, br)
        ragged_rows = rows_main - (n_tiles - 1) * br   # rows in the last tile

        # Unconditional 2-way split whenever there is more than one tile
        # (2 TensorCores on v7x; harmless sequential loop on v5e/v6e).
        num_splits = 2 if n_tiles >= 2 else 1
        tiles_per = pl.cdiv(n_tiles, num_splits)
        has_overflow = num_splits * tiles_per != n_tiles

        if tail:
            main = rows_main * lanes
            pred2d = pred_flat[:main].reshape(rows_main, lanes)
            gt2d = gt_flat[:main].reshape(rows_main, lanes)
        else:                       # no slice op at all when lane-aligned
            pred2d = pred_flat.reshape(rows_main, lanes)
            gt2d = gt_flat.reshape(rows_main, lanes)

        if has_overflow:
            # Overflow tile re-reads the last real block (wasted DMA, safe);
            # its accumulation is skipped in-kernel via the tile_id guards.
            def in_map(p, j):
                return (jnp.minimum(p * tiles_per + j, n_tiles - 1), 0)
        else:
            def in_map(p, j):
                return (p * tiles_per + j, 0)

        kernel = _make_focal_kernel(br, lanes, tiles_per, n_tiles, ragged_rows)

        parts = pl.pallas_call(
            kernel,
            out_shape=jax.ShapeDtypeStruct((num_splits, 3, 8, lanes),
                                           jnp.float32),
            grid_spec=pltpu.PrefetchScalarGridSpec(
                num_scalar_prefetch=0,
                grid=(num_splits, tiles_per),
                in_specs=[
                    pl.BlockSpec((br, lanes), in_map),
                    pl.BlockSpec((br, lanes), in_map),
                ],
                out_specs=pl.BlockSpec((1, 3, 8, lanes),
                                       lambda p, j: (p, 0, 0, 0)),
                scratch_shapes=[
                    pltpu.VMEM((8, lanes), jnp.float32),   # sum(pos+neg loss)
                    pltpu.VMEM((8, lanes), jnp.float32),   # sum(pos loss)
                    pltpu.VMEM((8, lanes), jnp.float32),   # num_pos
                ],
            ),
            compiler_params=pltpu.CompilerParams(
                dimension_semantics=("parallel", "arbitrary")),
        )(pred2d, gt2d)

        tot = jnp.sum(parts[:, 0])
        posl = jnp.sum(parts[:, 1])
        npos = jnp.sum(parts[:, 2])

    if tail:
        # < 128 leftover elements: essentially free in pure JAX, and it
        # avoids a full-array pad copy of both memory-bound input streams.
        off = rows_main * lanes
        t_tot, t_pos, t_np = _partials_jax(pred_flat[off:], gt_flat[off:])
        tot = tot + t_tot
        posl = posl + t_pos
        npos = npos + t_np

    neg = tot - posl
    # num_pos == 0 branch is intentionally unnormalized (-neg_loss), matching
    # CornerNet / the PyTorch reference.
    return jnp.where(npos == 0.0, -neg, -tot / jnp.maximum(npos, 1.0))


def _focal_loss_ref(pred, gt):
    pred = pred.astype(jnp.float32)
    gt = gt.astype(jnp.float32)
    pos_inds = (gt == 1.0).astype(jnp.float32)
    neg_inds = (gt < 1.0).astype(jnp.float32)
    neg_weights = (1.0 - gt) ** 4
    pos_loss = jnp.sum(jnp.log(pred) * (1.0 - pred) ** 2 * pos_inds)
    neg_loss = jnp.sum(jnp.log(1.0 - pred) * pred ** 2 * neg_weights * neg_inds)
    num_pos = jnp.sum(pos_inds)
    return jnp.where(num_pos == 0.0, -neg_loss,
                     -(pos_loss + neg_loss) / jnp.maximum(num_pos, 1.0))


if __name__ == "__main__":
    key = jax.random.PRNGKey(0)
    k1, k2, k3 = jax.random.split(key, 3)

    B, C, H, W = 2, 4, 16, 16  # NCHW, as in the PyTorch module

    # predictions: sigmoid of random logits -> strictly in (0, 1)
    pred = jax.nn.sigmoid(jax.random.normal(k1, (B, C, H, W), jnp.float32))

    # ground-truth heatmap: values in [0, 0.99] plus a few exact 1.0 peaks
    gt = jnp.clip(jax.random.uniform(k2, (B, C, H, W), jnp.float32) ** 3, 0.0, 0.99)
    flat_idx = jax.random.choice(k3, B * C * H * W, shape=(12,), replace=False)
    gt = gt.reshape(-1).at[flat_idx].set(1.0).reshape(B, C, H, W)

    loss = jax.block_until_ready(focal_loss(pred, gt))
    ref = _focal_loss_ref(pred, gt)
    assert jnp.allclose(loss, ref, rtol=1e-5, atol=1e-5), (loss, ref)

    print("KERNEL_OK")
</pallas_src>

<mosaic_0001>
module attributes {stable_mosaic.version = 11 : i64} {
  func.func @kernel(%arg0: i32, %arg1: i32, %arg2: memref<16x128xf32, #tpu.memory_space<vmem>>, %arg3: memref<16x128xf32, #tpu.memory_space<vmem>>, %arg4: memref<1x3x8x128xf32, #tpu.memory_space<vmem>>, %arg5: memref<8x128xf32, #tpu.memory_space<vmem>>, %arg6: memref<8x128xf32, #tpu.memory_space<vmem>>, %arg7: memref<8x128xf32, #tpu.memory_space<vmem>>) attributes {dimension_semantics = [#tpu.dimension_semantics<parallel>, #tpu.dimension_semantics<arbitrary>], iteration_bounds = array<i64: 1, 1>, scalar_prefetch = 0 : i64, scratch_operands = 3 : i64, tpu.core_type = #tpu.core_type<tc>, window_params = [{transform_indices = @transform_0, window_bounds = array<i64: 16, 128>}, {transform_indices = @transform_1, window_bounds = array<i64: 16, 128>}, {transform_indices = @transform_2, window_bounds = array<i64: 1, 3, 8, 128>}]} {
    %c1_i32 = arith.constant 1 : i32
    %0 = arith.muli %arg0, %c1_i32 : i32
    %1 = arith.addi %0, %arg1 : i32
    %c0_i32 = arith.constant 0 : i32
    %2 = arith.cmpi eq, %arg1, %c0_i32 : i32
    %3 = arith.extui %2 : i1 to i32
    %c0_i32_0 = arith.constant 0 : i32
    %4 = arith.cmpi ne, %3, %c0_i32_0 : i32
    scf.if %4 {
      %cst = arith.constant 0.000000e+00 : f32
      %11 = vector.broadcast %cst : f32 to vector<8x128xf32>
      %c0 = arith.constant 0 : index
      %c0_5 = arith.constant 0 : index
      %12 = vector.load %arg5[%c0, %c0_5] : memref<8x128xf32, #tpu.memory_space<vmem>>, vector<8x128xf32>
      tpu.vector_store %arg5[%c0, %c0_5], %11 {strides = array<i32>} : memref<8x128xf32, #tpu.memory_space<vmem>>, vector<8x128xf32>,
      %cst_6 = arith.constant 0.000000e+00 : f32
      %13 = vector.broadcast %cst_6 : f32 to vector<8x128xf32>
      %c0_7 = arith.constant 0 : index
      %c0_8 = arith.constant 0 : index
      %14 = vector.load %arg6[%c0_7, %c0_8] : memref<8x128xf32, #tpu.memory_space<vmem>>, vector<8x128xf32>
      tpu.vector_store %arg6[%c0_7, %c0_8], %13 {strides = array<i32>} : memref<8x128xf32, #tpu.memory_space<vmem>>, vector<8x128xf32>,
      %cst_9 = arith.constant 0.000000e+00 : f32
      %15 = vector.broadcast %cst_9 : f32 to vector<8x128xf32>
      %c0_10 = arith.constant 0 : index
      %c0_11 = arith.constant 0 : index
      %16 = vector.load %arg7[%c0_10, %c0_11] : memref<8x128xf32, #tpu.memory_space<vmem>>, vector<8x128xf32>
      tpu.vector_store %arg7[%c0_10, %c0_11], %15 {strides = array<i32>} : memref<8x128xf32, #tpu.memory_space<vmem>>, vector<8x128xf32>,
    } else {
    }
    %c1_i32_1 = arith.constant 1 : i32
    %5 = arith.cmpi slt, %1, %c1_i32_1 : i32
    %6 = arith.extui %5 : i1 to i32
    %c0_i32_2 = arith.constant 0 : i32
    %7 = arith.cmpi ne, %6, %c0_i32_2 : i32
    scf.if %7 {
      %c0 = arith.constant 0 : index
      %c0_5 = arith.constant 0 : index
      %11 = vector.load %arg2[%c0, %c0_5] : memref<16x128xf32, #tpu.memory_space<vmem>>, vector<16x128xf32>
      %c0_6 = arith.constant 0 : index
      %c0_7 = arith.constant 0 : index
      %12 = vector.load %arg3[%c0_6, %c0_7] : memref<16x128xf32, #tpu.memory_space<vmem>>, vector<16x128xf32>
      %cst = arith.constant 1.000000e+00 : f32
      %13 = vector.broadcast %cst : f32 to vector<16x128xf32>
      %14 = arith.cmpf oeq, %12, %13 : vector<16x128xf32>
      %cst_8 = arith.constant 1.000000e+00 : f32
      %15 = vector.broadcast %cst_8 : f32 to vector<16x128xf32>
      %16 = arith.cmpf ole, %12, %15 : vector<16x128xf32>
      %17 = arith.extui %14 : vector<16x128xi1> to vector<16x128xi32>
      %18 = arith.sitofp %17 : vector<16x128xi32> to vector<16x128xf32>
      %cst_9 = arith.constant 1.000000e+00 : f32
      %19 = vector.broadcast %cst_9 : f32 to vector<16x128xf32>
      %20 = arith.subf %19, %11 : vector<16x128xf32>
      %21 = arith.select %14, %11, %20 : vector<16x128xi1>, vector<16x128xf32>
      %cst_10 = arith.constant 1.000000e+00 : f32
      %22 = vector.broadcast %cst_10 : f32 to vector<16x128xf32>
      %23 = arith.subf %22, %21 : vector<16x128xf32>
      %cst_11 = arith.constant 1.000000e+00 : f32
      %24 = vector.broadcast %cst_11 : f32 to vector<16x128xf32>
      %25 = arith.subf %24, %12 : vector<16x128xf32>
      %26 = arith.mulf %25, %25 : vector<16x128xf32>
      %27 = arith.mulf %25, %25 : vector<16x128xf32>
      %28 = arith.mulf %26, %27 : vector<16x128xf32>
      %29 = arith.addf %18, %28 : vector<16x128xf32>
      %30 = math.log %21 : vector<16x128xf32>
      %31 = arith.mulf %23, %23 : vector<16x128xf32>
      %32 = arith.mulf %30, %31 : vector<16x128xf32>
      %33 = arith.mulf %32, %29 : vector<16x128xf32>
      %cst_12 = arith.constant 0.000000e+00 : f32
      %34 = vector.broadcast %cst_12 : f32 to vector<16x128xf32>
      %35 = arith.select %16, %33, %34 : vector<16x128xi1>, vector<16x128xf32>
      %cst_13 = arith.constant 0.000000e+00 : f32
      %36 = vector.broadcast %cst_13 : f32 to vector<16x128xf32>
      %37 = arith.select %14, %33, %36 : vector<16x128xi1>, vector<16x128xf32>
      %c0_14 = arith.constant 0 : index
      %c0_15 = arith.constant 0 : index
      %38 = vector.load %arg5[%c0_14, %c0_15] : memref<8x128xf32, #tpu.memory_space<vmem>>, vector<8x128xf32>
      %39 = vector.shape_cast %35 : vector<16x128xf32> to vector<2x8x128xf32>
      %cst_16 = arith.constant dense<0.000000e+00> : vector<8x128xf32>
      %40 = vector.multi_reduction <add>, %39, %cst_16 [0] : vector<2x8x128xf32> to vector<8x128xf32>
      %41 = arith.addf %38, %40 : vector<8x128xf32>
      %c0_17 = arith.constant 0 : index
      %c0_18 = arith.constant 0 : index
      %42 = vector.load %arg5[%c0_17, %c0_18] : memref<8x128xf32, #tpu.memory_space<vmem>>, vector<8x128xf32>
      tpu.vector_store %arg5[%c0_17, %c0_18], %41 {strides = array<i32>} : memref<8x128xf32, #tpu.memory_space<vmem>>, vector<8x128xf32>,
      %c0_19 = arith.constant 0 : index
      %c0_20 = arith.constant 0 : index
      %43 = vector.load %arg6[%c0_19, %c0_20] : memref<8x128xf32, #tpu.memory_space<vmem>>, vector<8x128xf32>
      %44 = vector.shape_cast %37 : vector<16x128xf32> to vector<2x8x128xf32>
      %cst_21 = arith.constant dense<0.000000e+00> : vector<8x128xf32>
      %45 = vector.multi_reduction <add>, %44, %cst_21 [0] : vector<2x8x128xf32> to vector<8x128xf32>
      %46 = arith.addf %43, %45 : vector<8x128xf32>
      %c0_22 = arith.constant 0 : index
      %c0_23 = arith.constant 0 : index
      %47 = vector.load %arg6[%c0_22, %c0_23] : memref<8x128xf32, #tpu.memory_space<vmem>>, vector<8x128xf32>
      tpu.vector_store %arg6[%c0_22, %c0_23], %46 {strides = array<i32>} : memref<8x128xf32, #tpu.memory_space<vmem>>, vector<8x128xf32>,
      %c0_24 = arith.constant 0 : index
      %c0_25 = arith.constant 0 : index
      %48 = vector.load %arg7[%c0_24, %c0_25] : memref<8x128xf32, #tpu.memory_space<vmem>>, vector<8x128xf32>
      %49 = vector.shape_cast %18 : vector<16x128xf32> to vector<2x8x128xf32>
      %cst_26 = arith.constant dense<0.000000e+00> : vector<8x128xf32>
      %50 = vector.multi_reduction <add>, %49, %cst_26 [0] : vector<2x8x128xf32> to vector<8x128xf32>
      %51 = arith.addf %48, %50 : vector<8x128xf32>
      %c0_27 = arith.constant 0 : index
      %c0_28 = arith.constant 0 : index
      %52 = vector.load %arg7[%c0_27, %c0_28] : memref<8x128xf32, #tpu.memory_space<vmem>>, vector<8x128xf32>
      tpu.vector_store %arg7[%c0_27, %c0_28], %51 {strides = array<i32>} : memref<8x128xf32, #tpu.memory_space<vmem>>, vector<8x128xf32>,
    } else {
    }
    %c0_i32_3 = arith.constant 0 : i32
    %8 = arith.cmpi eq, %arg1, %c0_i32_3 : i32
    %9 = arith.extui %8 : i1 to i32
    %c0_i32_4 = arith.constant 0 : i32
    %10 = arith.cmpi ne, %9, %c0_i32_4 : i32
    scf.if %10 {
      %c0 = arith.constant 0 : index
      %c0_5 = arith.constant 0 : index
      %11 = vector.load %arg5[%c0, %c0_5] : memref<8x128xf32, #tpu.memory_space<vmem>>, vector<8x128xf32>
      %c0_6 = arith.constant 0 : index
      %c0_7 = arith.constant 0 : index
      %c0_8 = arith.constant 0 : index
      %c0_9 = arith.constant 0 : index
      %12 = vector.load %arg4[%c0_6, %c0_7, %c0_8, %c0_9] : memref<1x3x8x128xf32, #tpu.memory_space<vmem>>, vector<1x1x8x128xf32>
      %13 = vector.shape_cast %12 : vector<1x1x8x128xf32> to vector<8x128xf32>
      %14 = vector.shape_cast %11 : vector<8x128xf32> to vector<1x1x8x128xf32>
      tpu.vector_store %arg4[%c0_6, %c0_7, %c0_8, %c0_9], %14 {strides = array<i32>} : memref<1x3x8x128xf32, #tpu.memory_space<vmem>>, vector<1x1x8x128xf32>,
      %c0_10 = arith.constant 0 : index
      %c0_11 = arith.constant 0 : index
      %15 = vector.load %arg6[%c0_10, %c0_11] : memref<8x128xf32, #tpu.memory_space<vmem>>, vector<8x128xf32>
      %c0_12 = arith.constant 0 : index
      %c1 = arith.constant 1 : index
      %c0_13 = arith.constant 0 : index
      %c0_14 = arith.constant 0 : index
      %16 = vector.load %arg4[%c0_12, %c1, %c0_13, %c0_14] : memref<1x3x8x128xf32, #tpu.memory_space<vmem>>, vector<1x1x8x128xf32>
      %17 = vector.shape_cast %16 : vector<1x1x8x128xf32> to vector<8x128xf32>
      %18 = vector.shape_cast %15 : vector<8x128xf32> to vector<1x1x8x128xf32>
      tpu.vector_store %arg4[%c0_12, %c1, %c0_13, %c0_14], %18 {strides = array<i32>} : memref<1x3x8x128xf32, #tpu.memory_space<vmem>>, vector<1x1x8x128xf32>,
      %c0_15 = arith.constant 0 : index
      %c0_16 = arith.constant 0 : index
      %19 = vector.load %arg7[%c0_15, %c0_16] : memref<8x128xf32, #tpu.memory_space<vmem>>, vector<8x128xf32>
      %c0_17 = arith.constant 0 : index
      %c2 = arith.constant 2 : index
      %c0_18 = arith.constant 0 : index
      %c0_19 = arith.constant 0 : index
      %20 = vector.load %arg4[%c0_17, %c2, %c0_18, %c0_19] : memref<1x3x8x128xf32, #tpu.memory_space<vmem>>, vector<1x1x8x128xf32>
      %21 = vector.shape_cast %20 : vector<1x1x8x128xf32> to vector<8x128xf32>
      %22 = vector.shape_cast %19 : vector<8x128xf32> to vector<1x1x8x128xf32>
      tpu.vector_store %arg4[%c0_17, %c2, %c0_18, %c0_19], %22 {strides = array<i32>} : memref<1x3x8x128xf32, #tpu.memory_space<vmem>>, vector<1x1x8x128xf32>,
    } else {
    }
    return
  }
  func.func @transform_0(%arg0: i32, %arg1: i32) -> (i32, i32) {
    %c1_i32 = arith.constant 1 : i32
    %0 = arith.muli %arg0, %c1_i32 : i32
    %1 = arith.addi %0, %arg1 : i32
    %c0_i32 = arith.constant 0 : i32
    %c0_i32_0 = arith.constant 0 : i32
    return %1, %c0_i32 : i32, i32
  }
  func.func @transform_1(%arg0: i32, %arg1: i32) -> (i32, i32) {
    %c1_i32 = arith.constant 1 : i32
    %0 = arith.muli %arg0, %c1_i32 : i32
    %1 = arith.addi %0, %arg1 : i32
    %c0_i32 = arith.constant 0 : i32
    %c0_i32_0 = arith.constant 0 : i32
    return %1, %c0_i32 : i32, i32
  }
  func.func @transform_2(%arg0: i32, %arg1: i32) -> (i32, i32, i32, i32) {
    %c0_i32 = arith.constant 0 : i32
    %c0_i32_0 = arith.constant 0 : i32
    %c0_i32_1 = arith.constant 0 : i32
    %c0_i32_2 = arith.constant 0 : i32
    return %arg0, %c0_i32, %c0_i32_0, %c0_i32_1 : i32, i32, i32, i32
  }
}

</mosaic_0001>

<llo_original>
// kernel: tpu_custom_call.1
$region0: #{tpu_custom_call.1}
  #allocation0 [shape = 'u32[]', space=smem, size = 0x4, offset = 0x4, fixed_abs, tag = 'smem constant byte address 0x4 - core index']
  #allocation1 [shape = 'u32[144,128]{1,0:T(1,128)}', space=vmem, size = 0x12000, scoped, tag = 'internal scratch']
  #allocation2 [shape = 'f32[8,128]{1,0:T(8,128)}', space=vmem, size = 0x1000, scoped, tag = 'scratch operand']
  #allocation3 [shape = 'f32[8,128]{1,0:T(8,128)}', space=vmem, size = 0x1000, scoped, tag = 'scratch operand']
  #allocation4 [shape = 'f32[8,128]{1,0:T(8,128)}', space=vmem, size = 0x1000, scoped, tag = 'scratch operand']
  %s0 = inlined_call_operand.hbm [shape: f32[16,128], index: 0, kind: input, shape index: {}]
  %s1 = inlined_call_operand.hbm [shape: f32[16,128], index: 1, kind: input, shape index: {}]
  %s2 = inlined_call_operand.hbm [shape: f32[1,3,8,128], index: 2, kind: output, shape index: {}]
  %s3 = sld [smem:[#allocation0]]
  $region38: #{tpu_custom_call.1} parent=0
    _
  %s5 = ssub.s32 1, %s3
  %s6 = scalar_select 0, %s5, %s3
  $region1: #{tpu_custom_call.1} parent=0
    #allocation5 [shape = 'u8[8192]{0}', space=vmem, size = 0x2000, scoped, tag = 'input window, operand 0, single buffered']
    #allocation6 [shape = 's32[1]{0}', space=sflag, size = 0x4, scoped, tag = 'scoped memory for tpu_custom_call.1']
    #allocation7 [shape = 's32[1]{0}', space=sflag, size = 0x4, scoped, tag = 'scoped memory for tpu_custom_call.1']
    #allocation8 [shape = 'u8[8192]{0}', space=vmem, size = 0x2000, scoped, tag = 'input window, operand 1, single buffered']
    #allocation9 [shape = 's32[1]{0}', space=sflag, size = 0x4, scoped, tag = 'scoped memory for tpu_custom_call.1']
    #allocation10 [shape = 'u8[12288]{0}', space=vmem, size = 0x3000, scoped, tag = 'output window, operand 0, single buffered']
    %7 = vsyncpa [#allocation6], 0
    %8 = vsyncpa [#allocation9], 0
    %9 = vsyncpa [#allocation7], 0
    // Predicated region
    $region2: #{tpu_custom_call.1} parent=1 // pred_check
      _
    $region3: #{tpu_custom_call.1} parent=1 // pred_check_branch
      %11 = sbr.rel (0) target = $region5
    $region4: #{tpu_custom_call.1} parent=1 // pred_region
      %s12 = sadd.s32 0, 0
      %s13 = smul.u32 2, %s12
      %s15 = ssub.s32 256, 256
      %16 = vsyncadd [#allocation6], %s15
      %s17 = smul.addr %s13, 128
      %s18 = scalar_lea.hbm %s0, %s17
      %s19 = sshll.u32 [#allocation5], 4
      %s20 = int_to_ptr.vmem [resolvable:$true] %s19
      %25 = dma.hbm_to_vmem [thread:$0]  %s18, 256, %s20, [#allocation6], 128, 128, 8
    $region5: #{tpu_custom_call.1} parent=1 // pred_fallthru
      _
    // Predicated region
    $region6: #{tpu_custom_call.1} parent=1 // pred_check
      _
    $region7: #{tpu_custom_call.1} parent=1 // pred_check_branch
      %27 = sbr.rel (0) target = $region9
    $region8: #{tpu_custom_call.1} parent=1 // pred_region
      %s28 = sadd.s32 0, 0
      %s29 = smul.u32 2, %s28
      %s31 = ssub.s32 256, 256
      %32 = vsyncadd [#allocation9], %s31
      %s33 = smul.addr %s29, 128
      %s34 = scalar_lea.hbm %s1, %s33
      %s35 = sshll.u32 [#allocation8], 4
      %s36 = int_to_ptr.vmem [resolvable:$true] %s35
      %41 = dma.hbm_to_vmem [thread:$0]  %s34, 256, %s36, [#allocation9], 128, 128, 8
    $region9: #{tpu_custom_call.1} parent=1 // pred_fallthru
      _
    // Predicated region
    $region10: #{tpu_custom_call.1} parent=1 // pred_check
      _
    $region11: #{tpu_custom_call.1} parent=1 // pred_check_branch
      %43 = sbr.rel (0) target = $region13
    $region12: #{tpu_custom_call.1} parent=1 // pred_region
      %44 = dma.done [#allocation6], 256
    $region13: #{tpu_custom_call.1} parent=1 // pred_fallthru
      _
    // Predicated region
    $region14: #{tpu_custom_call.1} parent=1 // pred_check
      _
    $region15: #{tpu_custom_call.1} parent=1 // pred_check_branch
      %46 = sbr.rel (0) target = $region17
    $region16: #{tpu_custom_call.1} parent=1 // pred_region
      %47 = dma.done [#allocation9], 256
    $region17: #{tpu_custom_call.1} parent=1 // pred_fallthru
      _
    %s48 = sadd.s32 0, 0
    %s49 = smul.u32 2, %s48
    %s50 = sadd.s32 0, 0
    %s51 = smul.u32 2, %s50
    %s52 = sadd.s32 0, 0
    %p53 = scmp.eq.s32.totalorder 0, 0
    // Predicated region
    $region18: #{tpu_custom_call.1} parent=1 // pred_check
      %p54 = pneg %p53
    $region19: #{tpu_custom_call.1} parent=1 // pred_check_branch
      %56 = sbr.rel (%p54) target = $region21
    $region20: #{tpu_custom_call.1} parent=1 // pred_region
      %57 = vst [vmem:[#allocation2] sm:$0xff] 0.0
      %58 = vst [vmem:[#allocation3] sm:$0xff] 0.0
      %59 = vst [vmem:[#allocation4] sm:$0xff] 0.0
    $region21: #{tpu_custom_call.1} parent=1 // pred_fallthru
      _
    %p60 = scmp.lt.s32.totalorder %s52, 1
    // Predicated region
    $region22: #{tpu_custom_call.1} parent=1 // pred_check
      %p61 = pneg %p60
    $region23: #{tpu_custom_call.1} parent=1 // pred_check_branch
      %63 = sbr.rel (%p61) target = $region25
    $region24: #{tpu_custom_call.1} parent=1 // pred_region
      %v64 = vld [vmem:[#allocation5] sm:$0xff]
      %v65 = vld [vmem:[#allocation5 + $0x8] sm:$0xff]
      %v66 = vld [vmem:[#allocation8] sm:$0xff]
      %v67 = vld [vmem:[#allocation8 + $0x8] sm:$0xff]
      %vm68 = vcmp.eq.f32.partialorder %v66, 1.0
      %vm69 = vcmp.eq.f32.partialorder %v67, 1.0
      %vm70 = vcmp.le.f32.partialorder %v66, 1.0
      %vm71 = vcmp.le.f32.partialorder %v67, 1.0
      %v72 = vsel %vm68, 1, 0
      %v73 = vsel %vm69, 1, 0
      %v74 = vcvt.s32.f32 %v72
      %v75 = vcvt.s32.f32 %v73
      %v76 = vsub.f32 1.0, %v64
      %v77 = vsub.f32 1.0, %v65
      %v78 = vsel %vm68, %v64, %v76
      %v79 = vsel %vm69, %v65, %v77
      %v80 = vsub.f32 1.0, %v78
      %v81 = vsub.f32 1.0, %v79
      %v82 = vsub.f32 1.0, %v66
      %v83 = vsub.f32 1.0, %v67
      %v84 = vmul.f32 %v82, %v82
      %v85 = vmul.f32 %v83, %v83
      %v86 = vmul.f32 %v84, %v84
      %v87 = vmul.f32 %v85, %v85
      %v88 = vadd.f32 %v74, %v86
      %v89 = vadd.f32 %v75, %v87
      %v90 = vlog2.pop %v78
      %v91 = vmul.f32 %v90, 0.6931472
      %v92 = vlog2.pop %v79
      %v93 = vmul.f32 %v92, 0.6931472
      %v94 = vmul.f32 %v80, %v80
      %v95 = vmul.f32 %v81, %v81
      %v96 = vmul.f32 %v91, %v94
      %v97 = vmul.f32 %v93, %v95
      %v98 = vmul.f32 %v96, %v88
      %v99 = vmul.f32 %v97, %v89
      %v100 = vsel %vm70, %v98, 0.0
      %v101 = vsel %vm71, %v99, 0.0
      %v102 = vsel %vm68, %v98, 0.0
      %v103 = vsel %vm69, %v99, 0.0
      %v104 = vld [vmem:[#allocation2] sm:$0xff]
      %v105 = vadd.f32 %v100, %v101
      %v106 = vadd.f32 %v104, %v105
      %107 = vst [vmem:[#allocation2] sm:$0xff] %v106
      %v108 = vld [vmem:[#allocation3] sm:$0xff]
      %v109 = vadd.f32 %v102, %v103
      %v110 = vadd.f32 %v108, %v109
      %111 = vst [vmem:[#allocation3] sm:$0xff] %v110
      %v112 = vld [vmem:[#allocation4] sm:$0xff]
      %v113 = vadd.f32 %v74, %v75
      %v114 = vadd.f32 %v112, %v113
      %115 = vst [vmem:[#allocation4] sm:$0xff] %v114
    $region25: #{tpu_custom_call.1} parent=1 // pred_fallthru
      _
    // Predicated region
    $region26: #{tpu_custom_call.1} parent=1 // pred_check
      %p116 = pneg %p53
    $region27: #{tpu_custom_call.1} parent=1 // pred_check_branch
      %118 = sbr.rel (%p116) target = $region29
    $region28: #{tpu_custom_call.1} parent=1 // pred_region
      %v119 = vld [vmem:[#allocation2] sm:$0xff]
      %120 = vst [vmem:[#allocation10] sm:$0xff] %v119
      %v121 = vld [vmem:[#allocation3] sm:$0xff]
      %s122 = scalar_lea.vmem [#allocation10], 8
      %123 = vst [vmem:[%s122] sm:$0xff] %v121
      %v124 = vld [vmem:[#allocation4] sm:$0xff]
      %s125 = scalar_lea.vmem [#allocation10], 16
      %126 = vst [vmem:[%s125] sm:$0xff] %v124
    $region29: #{tpu_custom_call.1} parent=1 // pred_fallthru
      _
    // Predicated region
    $region30: #{tpu_custom_call.1} parent=1 // pred_check
      _
    $region31: #{tpu_custom_call.1} parent=1 // pred_check_branch
      %128 = sbr.rel (0) target = $region33
    $region32: #{tpu_custom_call.1} parent=1 // pred_region
      %s130 = ssub.s32 384, 384
      %131 = vsyncadd [#allocation7], %s130
      %s132 = sshll.u32 [#allocation10], 4
      %s133 = int_to_ptr.vmem [resolvable:$true] %s132
      %138 = dma.vmem_to_hbm [thread:$0]  %s133, 384, %s2, [#allocation7], 128, 128, 8
    $region33: #{tpu_custom_call.1} parent=1 // pred_fallthru
      _
    // Predicated region
    $region34: #{tpu_custom_call.1} parent=1 // pred_check
      _
    $region35: #{tpu_custom_call.1} parent=1 // pred_check_branch
      %140 = sbr.rel (0) target = $region37
    $region36: #{tpu_custom_call.1} parent=1 // pred_region
      %141 = dma.done [#allocation7], 384
    $region37: #{tpu_custom_call.1} parent=1 // pred_fallthru
      _
    %142 = vsyncpa [#allocation6], 1
    %143 = vsyncpa [#allocation9], 1
    %144 = vsyncpa [#allocation7], 1

</llo_original>
